<compile_context>
chip_gen: v7x
topology: tpu7x:2x2x1
jax: 0.10.0
libtpu: 0.0.40
codegen_flags: <defaults>
</compile_context>

<pallas_src>
import math
import numpy as np
import jax
import jax.numpy as jnp
from jax.experimental import pallas as pl
from jax.experimental.pallas import tpu as pltpu


# ----------------------------------------------------------------------------
# Host-side (init-time) Newton solver for the Lagrange multipliers.
# Pure scalar numpy, executed once at construction — not a hot path.
# ----------------------------------------------------------------------------
def solve_mean_lagrange(x, mu, lam=0.0, max_iter=20, tol=1e-15):
    i = 0
    old_lam = lam

    def fx_mean(lam1, x, mu):
        return mu / np.exp(-1) - np.dot(x, np.exp(-lam1 * x))

    def dxfx_mean(lam1, x):
        return np.dot(x ** 2, np.exp(-lam1 * x)) + np.exp(-lam1 * x).sum()

    while abs(fx_mean(lam, x, mu)) > tol:
        lam = old_lam - fx_mean(lam, x, mu) / dxfx_mean(lam, x)
        old_lam = lam
        i += 1
        if i > max_iter:
            break
    return lam


# ----------------------------------------------------------------------------
# Helpers
# ----------------------------------------------------------------------------
def _focal_pow(x, gamma):
    """x**gamma, but small positive integer exponents become VALU multiplies
    instead of EUP exp/log."""
    g = float(gamma)
    gi = int(g)
    if g == gi and 0 < gi <= 4:
        r = x
        for _ in range(gi - 1):
            r = r * x
        return r
    return x ** g


def _choose_row_tile(rows_total, lane_width, streams, max_row_tile=None):
    """Pick the row tile so DOUBLE-BUFFERED streamed inputs stay ~10 MiB —
    safely under the smallest per-generation scoped-VMEM default (v5e 16 MiB),
    so no vmem_limit_bytes override is needed on any generation (v7x physical
    VMEM is only 64 MiB, so we deliberately do not chase huge tiles)."""
    budget = 10 * 1024 * 1024
    per_row = lane_width * 2 * sum(int(s.dtype.itemsize) for s in streams)
    cap = (budget // max(per_row, 1)) // 8 * 8
    cap = max(8, min(cap, 2048))           # bound unroll / trace size too
    if max_row_tile is not None:
        cap = min(cap, max(8, (int(max_row_tile) // 8) * 8))
    if rows_total <= cap:
        return rows_total                  # full extent (allowed even if %8 != 0)
    return cap                             # multiple of 8


# ----------------------------------------------------------------------------
# Pallas kernel factory.
# Layout: every B*C stream is presented as a (rows, L) slab, L = lcm(C, 128);
# per-class constants are periodic (1, L) rows; output is a (1, 1) scalar,
# accumulated through a resident lane-dense (acc_rows, L) VMEM scratch.
# ----------------------------------------------------------------------------
def _make_maxent_kernel(*, gamma, eps, constraints, has_w_stream, has_w_row,
                        tile_rows, lane_width, n_valid, batch, need_mask,
                        acc_rows):
    gamma = float(gamma)
    eps = float(eps)
    inv_b = 1.0 / float(batch)

    def kernel(*refs):
        it = iter(refs)
        p_ref = next(it)
        y_ref = next(it)
        w_ref = next(it) if has_w_stream else None
        mu_ref = lam_ref = None
        if constraints == 1:
            mu_ref = next(it)
            lam_ref = next(it)
        wrow_ref = next(it) if has_w_row else None
        out_ref = next(it)
        acc_ref = next(it)

        step = pl.program_id(0)
        last = pl.num_programs(0) - 1

        @pl.when(step == 0)
        def _init():
            acc_ref[...] = jnp.zeros_like(acc_ref)

        def tile_summand(apply_mask):
            # Upcast right after load (inputs may be bf16 to halve HBM traffic).
            p = p_ref[...].astype(jnp.float32)          # (TR, L)
            y = y_ref[...].astype(jnp.float32)
            one_m_p = 1.0 - p
            los_pos = y * jnp.log(jnp.maximum(p, eps))
            los_neg = (1.0 - y) * jnp.log(jnp.maximum(one_m_p, eps))
            if gamma > 0:
                los_pos = los_pos * _focal_pow(one_m_p, gamma)
                los_neg = los_neg * _focal_pow(p, gamma)
            s = los_pos + los_neg
            if has_w_stream:
                s = w_ref[...].astype(jnp.float32) * s
            if has_w_row:
                s = wrow_ref[...] * s                   # per-class weights row
            s = -s
            if constraints == 1:
                # lam_1 * |(1 - p) - target_mu|, periodic (1, L) rows broadcast
                # over sublanes.
                s = s + lam_ref[...] * jnp.abs(one_m_p - mu_ref[...])
            if apply_mask:
                # Select (not multiply) so garbage/Inf/NaN in OOB or padded
                # lanes never leaks into the sum.
                row = jax.lax.broadcasted_iota(jnp.int32, s.shape, 0)
                lane = jax.lax.broadcasted_iota(jnp.int32, s.shape, 1)
                flat = (step * tile_rows + row) * lane_width + lane
                s = jnp.where(flat < n_valid, s, 0.0)
            return s

        def accumulate(s):
            if acc_rows == 8:
                # Pure vreg-aligned VALU adds: fold row groups of 8 into the
                # resident (8, L) accumulator.  No per-step XLU reduce.
                part = s[0:8, :]
                for r0 in range(8, tile_rows, 8):
                    part = part + s[r0:r0 + 8, :]
                acc_ref[...] += part
            else:
                # Small full-extent tiles (rows not a multiple of 8).
                acc_ref[...] += jnp.sum(s, axis=0, keepdims=True)

        if need_mask:
            @pl.when(step == last)
            def _masked():
                accumulate(tile_summand(True))

            @pl.when(step != last)
            def _unmasked():
                accumulate(tile_summand(False))
        else:
            accumulate(tile_summand(False))

        @pl.when(step == last)
        def _finalize():
            out_ref[...] = (jnp.sum(acc_ref[...], axis=(0, 1), keepdims=True)
                            * inv_b)

    return kernel


class MaxEntLossPallas:
    """JAX/Pallas port of the PyTorch MaxEntLoss module (forward only)."""

    def __init__(self, ratio, constraints, gamma=2, num_classes=10, eps=1e-07):
        self.gamma = gamma
        self.eps = eps
        self.constraints = constraints
        self.num_classes = num_classes

        ratio = np.asarray(ratio, dtype=np.float64)
        x = np.arange(num_classes, dtype=np.float64)
        target_mu = 1.0 - ratio
        lam_1 = np.zeros(len(ratio), dtype=np.float64)
        for i, mu in enumerate(target_mu):
            lam_1[i] = solve_mean_lagrange(x, mu)

        self.target_mu = jnp.asarray(target_mu, dtype=jnp.float32)   # (C,)
        self.lam_1 = jnp.asarray(lam_1, dtype=jnp.float32)           # (C,)

        # Lane-dense flattened layout parameters: L = lcm(C, 128) lanes per
        # row; class of a lane is (lane mod C), identical on every row.
        self.lane_width = num_classes * 128 // math.gcd(num_classes, 128)
        self._lane_class = np.arange(self.lane_width) % num_classes
        self._mu_row = jnp.asarray(target_mu[self._lane_class],
                                   dtype=jnp.float32)[None, :]        # (1, L)
        self._lam_row = jnp.asarray(lam_1[self._lane_class],
                                    dtype=jnp.float32)[None, :]       # (1, L)

    def __call__(self, p, y, weights=None, *, max_row_tile=None):
        p = jnp.asarray(p)
        y = jnp.asarray(y)
        B, C = p.shape
        assert C == self.num_classes
        if y.shape != p.shape:
            y = jnp.broadcast_to(y, p.shape)

        L = self.lane_width
        N = B * C
        rows_total = -(-N // L)
        tail_pad = rows_total * L - N    # 0 whenever B*C % lcm(C,128) == 0

        def to2d(a):
            flat = a.reshape(-1)                         # free view (contiguous)
            if tail_pad:
                # Only for awkward batch sizes; < L elements of actual padding
                # (still one copy, so prefer B % (128/gcd(C,128)) == 0).
                flat = jnp.pad(flat, (0, tail_pad))
            return flat.reshape(rows_total, L)

        streams = [to2d(p), to2d(y)]
        has_w_stream = False
        has_w_row = False
        w_row = None
        if weights is not None:
            w = jnp.asarray(weights)
            if (w.ndim == 1 and w.shape[0] == C) or \
               (w.ndim == 2 and w.shape == (1, C)):
                # Per-class weights: fold into a periodic lane row instead of
                # streaming an extra B*C array from HBM.
                w_row = w.reshape(-1).astype(jnp.float32)[self._lane_class][None, :]
                has_w_row = True
            else:
                if w.shape != p.shape:
                    w = jnp.broadcast_to(w, p.shape)
                streams.append(to2d(w))
                has_w_stream = True

        tile_rows = _choose_row_tile(rows_total, L, streams, max_row_tile)
        grid = pl.cdiv(rows_total, tile_rows)
        need_mask = (tail_pad != 0) or (rows_total % tile_rows != 0)
        acc_rows = 8 if (tile_rows % 8 == 0) else 1

        in_specs = [pl.BlockSpec((tile_rows, L), lambda i: (i, 0))
                    for _ in streams]
        inputs = list(streams)
        if self.constraints == 1:
            in_specs.append(pl.BlockSpec((1, L), lambda i: (0, 0)))
            in_specs.append(pl.BlockSpec((1, L), lambda i: (0, 0)))
            inputs.append(self._mu_row)
            inputs.append(self._lam_row)
        if has_w_row:
            in_specs.append(pl.BlockSpec((1, L), lambda i: (0, 0)))
            inputs.append(w_row)

        kernel = _make_maxent_kernel(
            gamma=self.gamma, eps=self.eps, constraints=self.constraints,
            has_w_stream=has_w_stream, has_w_row=has_w_row,
            tile_rows=tile_rows, lane_width=L, n_valid=N, batch=B,
            need_mask=need_mask, acc_rows=acc_rows)

        out = pl.pallas_call(
            kernel,
            out_shape=jax.ShapeDtypeStruct((1, 1), jnp.float32),
            grid=(grid,),
            in_specs=in_specs,
            out_specs=pl.BlockSpec((1, 1), lambda i: (0, 0)),
            scratch_shapes=[pltpu.VMEM((acc_rows, L), jnp.float32)],
            compiler_params=pltpu.CompilerParams(
                dimension_semantics=("arbitrary",)),
        )(*inputs)

        return out[0, 0]


# ----------------------------------------------------------------------------
# Pure-JAX reference (mirrors the PyTorch forward) for sanity checking.
# ----------------------------------------------------------------------------
def _reference(loss_mod, p, y, weights):
    eps, gamma = loss_mod.eps, loss_mod.gamma
    p = jnp.asarray(p, jnp.float32)
    y = jnp.asarray(y, jnp.float32)
    los_pos = y * jnp.log(jnp.maximum(p, eps))
    los_neg = (1 - y) * jnp.log(jnp.maximum(1 - p, eps))
    if gamma > 0:
        los_pos = los_pos * (1 - p) ** gamma
        los_neg = los_neg * p ** gamma
    loss = los_pos + los_neg
    if weights is not None:
        loss = jnp.asarray(weights, jnp.float32) * loss
    out = -jnp.sum(loss, axis=1)
    if loss_mod.constraints == 1:
        mu_loss = jnp.abs((1 - p) - loss_mod.target_mu)
        out = out + (loss_mod.lam_1 * mu_loss).sum(1).mean()
    return out.mean()


if __name__ == "__main__":
    num_classes = 10
    ratio = np.linspace(0.1, 0.9, num_classes)

    key = jax.random.PRNGKey(0)
    ks = jax.random.split(key, 10)

    # ------------------------------------------------------------------
    # Test 1: small batch, constraints=1, gamma=2, full (B,C) weights.
    # ------------------------------------------------------------------
    B1 = 8
    mod1 = MaxEntLossPallas(ratio, constraints=1, gamma=2,
                            num_classes=num_classes)
    p1 = jax.nn.sigmoid(jax.random.normal(ks[0], (B1, num_classes),
                                          dtype=jnp.float32))
    y1 = (jax.random.uniform(ks[1], (B1, num_classes)) < 0.5).astype(jnp.float32)
    w1 = jax.random.uniform(ks[2], (B1, num_classes), dtype=jnp.float32) + 0.5
    r1 = mod1(p1, y1, w1)
    jax.block_until_ready(r1)
    np.testing.assert_allclose(np.asarray(r1),
                               np.asarray(_reference(mod1, p1, y1, w1)),
                               rtol=1e-4, atol=1e-5)

    # ------------------------------------------------------------------
    # Test 2: weights=None specialization, constraints=0.
    # ------------------------------------------------------------------
    mod2 = MaxEntLossPallas(ratio, constraints=0, gamma=2,
                            num_classes=num_classes)
    r2 = mod2(p1, y1, None)
    jax.block_until_ready(r2)
    np.testing.assert_allclose(np.asarray(r2),
                               np.asarray(_reference(mod2, p1, y1, None)),
                               rtol=1e-4, atol=1e-5)

    # ------------------------------------------------------------------
    # Test 3: copy-free reshape path (B*C % 640 == 0), multi-tile grid,
    # gamma=3 (repeated-multiply focal), vreg-partial accumulation.
    # ------------------------------------------------------------------
    B3 = 2048
    mod3 = MaxEntLossPallas(ratio, constraints=1, gamma=3,
                            num_classes=num_classes)
    p3 = jax.nn.sigmoid(jax.random.normal(ks[3], (B3, num_classes),
                                          dtype=jnp.float32))
    y3 = (jax.random.uniform(ks[4], (B3, num_classes)) < 0.5).astype(jnp.float32)
    w3 = jax.random.uniform(ks[5], (B3, num_classes), dtype=jnp.float32) + 0.5
    r3 = mod3(p3, y3, w3, max_row_tile=8)
    jax.block_until_ready(r3)
    np.testing.assert_allclose(np.asarray(r3),
                               np.asarray(_reference(mod3, p3, y3, w3)),
                               rtol=1e-4, atol=1e-5)

    # ------------------------------------------------------------------
    # Test 4: ragged tail (B*C % 640 != 0) with last-block select mask,
    # bf16 inputs (upcast in kernel), per-class (C,) weights folded into a
    # periodic lane row (no B*C weight stream).
    # ------------------------------------------------------------------
    B4 = 3000
    mod4 = MaxEntLossPallas(ratio, constraints=1, gamma=2,
                            num_classes=num_classes)
    p4 = jax.nn.sigmoid(jax.random.normal(ks[6], (B4, num_classes),
                                          dtype=jnp.float32)).astype(jnp.bfloat16)
    y4 = (jax.random.uniform(ks[7], (B4, num_classes)) < 0.5).astype(jnp.bfloat16)
    w4 = (jax.random.uniform(ks[8], (num_classes,), dtype=jnp.float32)
          + 0.5).astype(jnp.bfloat16)
    r4 = mod4(p4, y4, w4, max_row_tile=8)
    jax.block_until_ready(r4)
    np.testing.assert_allclose(np.asarray(r4),
                               np.asarray(_reference(mod4, p4, y4, w4)),
                               rtol=1e-3, atol=1e-4)

    print("KERNEL_OK")
</pallas_src>

<mosaic_0001>
module attributes {stable_mosaic.version = 11 : i64} {
  func.func @kernel(%arg0: i32, %arg1: memref<1x640xf32, #tpu.memory_space<vmem>>, %arg2: memref<1x640xf32, #tpu.memory_space<vmem>>, %arg3: memref<1x640xf32, #tpu.memory_space<vmem>>, %arg4: memref<1x640xf32, #tpu.memory_space<vmem>>, %arg5: memref<1x640xf32, #tpu.memory_space<vmem>>, %arg6: memref<1x1xf32, #tpu.memory_space<vmem>>, %arg7: memref<1x640xf32, #tpu.memory_space<vmem>>) attributes {dimension_semantics = [#tpu.dimension_semantics<arbitrary>], iteration_bounds = array<i64: 1>, scalar_prefetch = 0 : i64, scratch_operands = 1 : i64, tpu.core_type = #tpu.core_type<tc>, window_params = [{transform_indices = @transform_0, window_bounds = array<i64: 1, 640>}, {transform_indices = @transform_1, window_bounds = array<i64: 1, 640>}, {transform_indices = @transform_2, window_bounds = array<i64: 1, 640>}, {pipeline_mode = #tpu.pipeline_mode<synchronous>, transform_indices = @transform_3, window_bounds = array<i64: 1, 640>}, {pipeline_mode = #tpu.pipeline_mode<synchronous>, transform_indices = @transform_4, window_bounds = array<i64: 1, 640>}, {pipeline_mode = #tpu.pipeline_mode<synchronous>, transform_indices = @transform_5, window_bounds = array<i64: 1, 1>}]} {
    %c0_i32 = arith.constant 0 : i32
    %0 = arith.cmpi eq, %arg0, %c0_i32 : i32
    %1 = arith.extui %0 : i1 to i32
    %c0_i32_0 = arith.constant 0 : i32
    %2 = arith.cmpi ne, %1, %c0_i32_0 : i32
    scf.if %2 {
      %cst = arith.constant 0.000000e+00 : f32
      %12 = vector.broadcast %cst : f32 to vector<1x640xf32>
      %c0 = arith.constant 0 : index
      %c0_7 = arith.constant 0 : index
      %13 = vector.load %arg7[%c0, %c0_7] : memref<1x640xf32, #tpu.memory_space<vmem>>, vector<1x640xf32>
      tpu.vector_store %arg7[%c0, %c0_7], %12 {strides = array<i32>} : memref<1x640xf32, #tpu.memory_space<vmem>>, vector<1x640xf32>,
    } else {
    }
    %c0_i32_1 = arith.constant 0 : i32
    %3 = arith.cmpi eq, %arg0, %c0_i32_1 : i32
    %4 = arith.extui %3 : i1 to i32
    %c0_i32_2 = arith.constant 0 : i32
    %5 = arith.cmpi ne, %4, %c0_i32_2 : i32
    scf.if %5 {
      %c0 = arith.constant 0 : index
      %c0_7 = arith.constant 0 : index
      %12 = vector.load %arg1[%c0, %c0_7] : memref<1x640xf32, #tpu.memory_space<vmem>>, vector<1x640xf32>
      %c0_8 = arith.constant 0 : index
      %c0_9 = arith.constant 0 : index
      %13 = vector.load %arg2[%c0_8, %c0_9] : memref<1x640xf32, #tpu.memory_space<vmem>>, vector<1x640xf32>
      %cst = arith.constant 1.000000e+00 : f32
      %14 = vector.broadcast %cst : f32 to vector<1x640xf32>
      %15 = arith.subf %14, %12 : vector<1x640xf32>
      %cst_10 = arith.constant 1.000000e-07 : f32
      %16 = vector.broadcast %cst_10 : f32 to vector<1x640xf32>
      %17 = arith.maximumf %12, %16 : vector<1x640xf32>
      %18 = math.log %17 : vector<1x640xf32>
      %19 = arith.mulf %13, %18 : vector<1x640xf32>
      %cst_11 = arith.constant 1.000000e+00 : f32
      %20 = vector.broadcast %cst_11 : f32 to vector<1x640xf32>
      %21 = arith.subf %20, %13 : vector<1x640xf32>
      %cst_12 = arith.constant 1.000000e-07 : f32
      %22 = vector.broadcast %cst_12 : f32 to vector<1x640xf32>
      %23 = arith.maximumf %15, %22 : vector<1x640xf32>
      %24 = math.log %23 : vector<1x640xf32>
      %25 = arith.mulf %21, %24 : vector<1x640xf32>
      %26 = arith.mulf %15, %15 : vector<1x640xf32>
      %27 = arith.mulf %19, %26 : vector<1x640xf32>
      %28 = arith.mulf %12, %12 : vector<1x640xf32>
      %29 = arith.mulf %25, %28 : vector<1x640xf32>
      %30 = arith.addf %27, %29 : vector<1x640xf32>
      %c0_13 = arith.constant 0 : index
      %c0_14 = arith.constant 0 : index
      %31 = vector.load %arg3[%c0_13, %c0_14] : memref<1x640xf32, #tpu.memory_space<vmem>>, vector<1x640xf32>
      %32 = arith.mulf %31, %30 : vector<1x640xf32>
      %cst_15 = arith.constant 0.000000e+00 : f32
      %33 = vector.broadcast %cst_15 : f32 to vector<1x640xf32>
      %34 = arith.subf %33, %32 : vector<1x640xf32>
      %c0_16 = arith.constant 0 : index
      %c0_17 = arith.constant 0 : index
      %35 = vector.load %arg5[%c0_16, %c0_17] : memref<1x640xf32, #tpu.memory_space<vmem>>, vector<1x640xf32>
      %c0_18 = arith.constant 0 : index
      %c0_19 = arith.constant 0 : index
      %36 = vector.load %arg4[%c0_18, %c0_19] : memref<1x640xf32, #tpu.memory_space<vmem>>, vector<1x640xf32>
      %37 = arith.subf %15, %36 : vector<1x640xf32>
      %38 = math.absf %37 : vector<1x640xf32>
      %39 = arith.mulf %35, %38 : vector<1x640xf32>
      %40 = arith.addf %34, %39 : vector<1x640xf32>
      %41 = tpu.iota {dimensions = array<i32: 0>} : vector<1x640xi32>
      %42 = tpu.iota {dimensions = array<i32: 1>} : vector<1x640xi32>
      %c1_i32 = arith.constant 1 : i32
      %43 = arith.muli %arg0, %c1_i32 : i32
      %44 = vector.broadcast %43 : i32 to vector<1x640xi32>
      %45 = arith.addi %44, %41 : vector<1x640xi32>
      %c640_i32 = arith.constant 640 : i32
      %46 = vector.broadcast %c640_i32 : i32 to vector<1x640xi32>
      %47 = arith.muli %45, %46 : vector<1x640xi32>
      %48 = arith.addi %47, %42 : vector<1x640xi32>
      %c80_i32 = arith.constant 80 : i32
      %49 = vector.broadcast %c80_i32 : i32 to vector<1x640xi32>
      %50 = arith.cmpi slt, %48, %49 : vector<1x640xi32>
      %cst_20 = arith.constant 0.000000e+00 : f32
      %51 = vector.broadcast %cst_20 : f32 to vector<1x640xf32>
      %52 = arith.select %50, %40, %51 : vector<1x640xi1>, vector<1x640xf32>
      %c0_21 = arith.constant 0 : index
      %c0_22 = arith.constant 0 : index
      %53 = vector.load %arg7[%c0_21, %c0_22] : memref<1x640xf32, #tpu.memory_space<vmem>>, vector<1x640xf32>
      %cst_23 = arith.constant dense<0.000000e+00> : vector<640xf32>
      %54 = vector.multi_reduction <add>, %52, %cst_23 [0] : vector<1x640xf32> to vector<640xf32>
      %55 = vector.shape_cast %54 : vector<640xf32> to vector<1x640xf32>
      %56 = arith.addf %53, %55 : vector<1x640xf32>
      %c0_24 = arith.constant 0 : index
      %c0_25 = arith.constant 0 : index
      %57 = vector.load %arg7[%c0_24, %c0_25] : memref<1x640xf32, #tpu.memory_space<vmem>>, vector<1x640xf32>
      tpu.vector_store %arg7[%c0_24, %c0_25], %56 {strides = array<i32>} : memref<1x640xf32, #tpu.memory_space<vmem>>, vector<1x640xf32>,
    } else {
    }
    %c0_i32_3 = arith.constant 0 : i32
    %6 = arith.cmpi ne, %arg0, %c0_i32_3 : i32
    %7 = arith.extui %6 : i1 to i32
    %c0_i32_4 = arith.constant 0 : i32
    %8 = arith.cmpi ne, %7, %c0_i32_4 : i32
    scf.if %8 {
      %c0 = arith.constant 0 : index
      %c0_7 = arith.constant 0 : index
      %12 = vector.load %arg1[%c0, %c0_7] : memref<1x640xf32, #tpu.memory_space<vmem>>, vector<1x640xf32>
      %c0_8 = arith.constant 0 : index
      %c0_9 = arith.constant 0 : index
      %13 = vector.load %arg2[%c0_8, %c0_9] : memref<1x640xf32, #tpu.memory_space<vmem>>, vector<1x640xf32>
      %cst = arith.constant 1.000000e+00 : f32
      %14 = vector.broadcast %cst : f32 to vector<1x640xf32>
      %15 = arith.subf %14, %12 : vector<1x640xf32>
      %cst_10 = arith.constant 1.000000e-07 : f32
      %16 = vector.broadcast %cst_10 : f32 to vector<1x640xf32>
      %17 = arith.maximumf %12, %16 : vector<1x640xf32>
      %18 = math.log %17 : vector<1x640xf32>
      %19 = arith.mulf %13, %18 : vector<1x640xf32>
      %cst_11 = arith.constant 1.000000e+00 : f32
      %20 = vector.broadcast %cst_11 : f32 to vector<1x640xf32>
      %21 = arith.subf %20, %13 : vector<1x640xf32>
      %cst_12 = arith.constant 1.000000e-07 : f32
      %22 = vector.broadcast %cst_12 : f32 to vector<1x640xf32>
      %23 = arith.maximumf %15, %22 : vector<1x640xf32>
      %24 = math.log %23 : vector<1x640xf32>
      %25 = arith.mulf %21, %24 : vector<1x640xf32>
      %26 = arith.mulf %15, %15 : vector<1x640xf32>
      %27 = arith.mulf %19, %26 : vector<1x640xf32>
      %28 = arith.mulf %12, %12 : vector<1x640xf32>
      %29 = arith.mulf %25, %28 : vector<1x640xf32>
      %30 = arith.addf %27, %29 : vector<1x640xf32>
      %c0_13 = arith.constant 0 : index
      %c0_14 = arith.constant 0 : index
      %31 = vector.load %arg3[%c0_13, %c0_14] : memref<1x640xf32, #tpu.memory_space<vmem>>, vector<1x640xf32>
      %32 = arith.mulf %31, %30 : vector<1x640xf32>
      %cst_15 = arith.constant 0.000000e+00 : f32
      %33 = vector.broadcast %cst_15 : f32 to vector<1x640xf32>
      %34 = arith.subf %33, %32 : vector<1x640xf32>
      %c0_16 = arith.constant 0 : index
      %c0_17 = arith.constant 0 : index
      %35 = vector.load %arg5[%c0_16, %c0_17] : memref<1x640xf32, #tpu.memory_space<vmem>>, vector<1x640xf32>
      %c0_18 = arith.constant 0 : index
      %c0_19 = arith.constant 0 : index
      %36 = vector.load %arg4[%c0_18, %c0_19] : memref<1x640xf32, #tpu.memory_space<vmem>>, vector<1x640xf32>
      %37 = arith.subf %15, %36 : vector<1x640xf32>
      %38 = math.absf %37 : vector<1x640xf32>
      %39 = arith.mulf %35, %38 : vector<1x640xf32>
      %40 = arith.addf %34, %39 : vector<1x640xf32>
      %c0_20 = arith.constant 0 : index
      %c0_21 = arith.constant 0 : index
      %41 = vector.load %arg7[%c0_20, %c0_21] : memref<1x640xf32, #tpu.memory_space<vmem>>, vector<1x640xf32>
      %cst_22 = arith.constant dense<0.000000e+00> : vector<640xf32>
      %42 = vector.multi_reduction <add>, %40, %cst_22 [0] : vector<1x640xf32> to vector<640xf32>
      %43 = vector.shape_cast %42 : vector<640xf32> to vector<1x640xf32>
      %44 = arith.addf %41, %43 : vector<1x640xf32>
      %c0_23 = arith.constant 0 : index
      %c0_24 = arith.constant 0 : index
      %45 = vector.load %arg7[%c0_23, %c0_24] : memref<1x640xf32, #tpu.memory_space<vmem>>, vector<1x640xf32>
      tpu.vector_store %arg7[%c0_23, %c0_24], %44 {strides = array<i32>} : memref<1x640xf32, #tpu.memory_space<vmem>>, vector<1x640xf32>,
    } else {
    }
    %c0_i32_5 = arith.constant 0 : i32
    %9 = arith.cmpi eq, %arg0, %c0_i32_5 : i32
    %10 = arith.extui %9 : i1 to i32
    %c0_i32_6 = arith.constant 0 : i32
    %11 = arith.cmpi ne, %10, %c0_i32_6 : i32
    scf.if %11 {
      %c0 = arith.constant 0 : index
      %c0_7 = arith.constant 0 : index
      %12 = vector.load %arg7[%c0, %c0_7] : memref<1x640xf32, #tpu.memory_space<vmem>>, vector<1x640xf32>
      %13 = vector.shape_cast %12 : vector<1x640xf32> to vector<1x1x640xf32>
      %cst = arith.constant dense<0.000000e+00> : vector<1xf32>
      %14 = vector.multi_reduction <add>, %13, %cst [1, 2] : vector<1x1x640xf32> to vector<1xf32>
      %15 = vector.shape_cast %14 : vector<1xf32> to vector<1x1x1xf32>
      %16 = vector.extract %15[0, 0, 0] : f32 from vector<1x1x1xf32>
      %17 = vector.broadcast %16 : f32 to vector<1x1xf32>
      %cst_8 = arith.constant 1.250000e-01 : f32
      %18 = vector.broadcast %cst_8 : f32 to vector<1x1xf32>
      %19 = arith.mulf %17, %18 : vector<1x1xf32>
      %c0_9 = arith.constant 0 : index
      %c0_10 = arith.constant 0 : index
      %20 = vector.load %arg6[%c0_9, %c0_10] : memref<1x1xf32, #tpu.memory_space<vmem>>, vector<1x1xf32>
      tpu.vector_store %arg6[%c0_9, %c0_10], %19 {strides = array<i32>} : memref<1x1xf32, #tpu.memory_space<vmem>>, vector<1x1xf32>,
    } else {
    }
    return
  }
  func.func @transform_0(%arg0: i32) -> (i32, i32) {
    %c0_i32 = arith.constant 0 : i32
    %c0_i32_0 = arith.constant 0 : i32
    return %arg0, %c0_i32 : i32, i32
  }
  func.func @transform_1(%arg0: i32) -> (i32, i32) {
    %c0_i32 = arith.constant 0 : i32
    %c0_i32_0 = arith.constant 0 : i32
    return %arg0, %c0_i32 : i32, i32
  }
  func.func @transform_2(%arg0: i32) -> (i32, i32) {
    %c0_i32 = arith.constant 0 : i32
    %c0_i32_0 = arith.constant 0 : i32
    return %arg0, %c0_i32 : i32, i32
  }
  func.func @transform_3(%arg0: i32) -> (i32, i32) {
    %c0_i32 = arith.constant 0 : i32
    %c0_i32_0 = arith.constant 0 : i32
    %c0_i32_1 = arith.constant 0 : i32
    return %c0_i32, %c0_i32_0 : i32, i32
  }
  func.func @transform_4(%arg0: i32) -> (i32, i32) {
    %c0_i32 = arith.constant 0 : i32
    %c0_i32_0 = arith.constant 0 : i32
    %c0_i32_1 = arith.constant 0 : i32
    return %c0_i32, %c0_i32_0 : i32, i32
  }
  func.func @transform_5(%arg0: i32) -> (i32, i32) {
    %c0_i32 = arith.constant 0 : i32
    %c0_i32_0 = arith.constant 0 : i32
    %c0_i32_1 = arith.constant 0 : i32
    return %c0_i32, %c0_i32_0 : i32, i32
  }
}

</mosaic_0001>

<llo_original>
// kernel: tpu_custom_call.1
$region0: #{tpu_custom_call.1}
  #allocation0 [shape = 'u32[]', space=smem, size = 0x4, offset = 0x4, fixed_abs, tag = 'smem constant byte address 0x4 - core index']
  #allocation1 [shape = 'u32[144,128]{1,0:T(1,128)}', space=vmem, size = 0x12000, scoped, tag = 'internal scratch']
  #allocation2 [shape = 'f32[1,640]{1,0:T(1,128)}', space=vmem, size = 0xa00, scoped, tag = 'scratch operand']
  %s0 = inlined_call_operand.hbm [shape: f32[1,640], index: 0, kind: input, shape index: {}]
  %s1 = inlined_call_operand.hbm [shape: f32[1,640], index: 1, kind: input, shape index: {}]
  %s2 = inlined_call_operand.vmem [shape: f32[1,640], index: 2, kind: input, shape index: {}]
  %s3 = inlined_call_operand.vmem [shape: f32[1,640], index: 3, kind: input, shape index: {}]
  %s4 = inlined_call_operand.vmem [shape: f32[1,640], index: 4, kind: input, shape index: {}]
  %s5 = inlined_call_operand.hbm [shape: f32[1,1], index: 5, kind: output, shape index: {}]
  %s6 = sld [smem:[#allocation0]]
  $region50: #{tpu_custom_call.1} parent=0
    _
  %s8 = ssub.s32 1, %s6
  %s9 = scalar_select 0, %s8, %s6
  $region1: #{tpu_custom_call.1} parent=0
    #allocation3 [shape = 'u8[2560]{0}', space=vmem, size = 0xc00, scoped, tag = 'input window, operand 0, single buffered']
    #allocation4 [shape = 's32[1]{0}', space=sflag, size = 0x4, scoped, tag = 'scoped memory for tpu_custom_call.1']
    #allocation5 [shape = 's32[1]{0}', space=sflag, size = 0x4, scoped, tag = 'scoped memory for tpu_custom_call.1']
    #allocation6 [shape = 'u8[2560]{0}', space=vmem, size = 0xc00, scoped, tag = 'input window, operand 1, single buffered']
    #allocation7 [shape = 's32[1]{0}', space=sflag, size = 0x4, scoped, tag = 'scoped memory for tpu_custom_call.1']
    #allocation8 [shape = 'u8[512]{0}', space=vmem, size = 0x400, scoped, tag = 'output window, operand 0, single buffered']
    %10 = vsyncpa [#allocation4], 0
    %11 = vsyncpa [#allocation7], 0
    %12 = vsyncpa [#allocation5], 0
    // Predicated region
    $region2: #{tpu_custom_call.1} parent=1 // pred_check
      _
    $region3: #{tpu_custom_call.1} parent=1 // pred_check_branch
      %14 = sbr.rel (0) target = $region5
    $region4: #{tpu_custom_call.1} parent=1 // pred_region
      %s16 = ssub.s32 80, 80
      %17 = vsyncadd [#allocation4], %s16
      %s19 = sshll.u32 [#allocation3], 4
      %s20 = int_to_ptr.vmem [resolvable:$true] %s19
      %22 = dma.hbm_to_vmem [thread:$0]  %s0, 80, %s20, [#allocation4]
    $region5: #{tpu_custom_call.1} parent=1 // pred_fallthru
      _
    // Predicated region
    $region6: #{tpu_custom_call.1} parent=1 // pred_check
      _
    $region7: #{tpu_custom_call.1} parent=1 // pred_check_branch
      %24 = sbr.rel (0) target = $region9
    $region8: #{tpu_custom_call.1} parent=1 // pred_region
      %s26 = ssub.s32 80, 80
      %27 = vsyncadd [#allocation7], %s26
      %s29 = sshll.u32 [#allocation6], 4
      %s30 = int_to_ptr.vmem [resolvable:$true] %s29
      %32 = dma.hbm_to_vmem [thread:$0]  %s1, 80, %s30, [#allocation7]
    $region9: #{tpu_custom_call.1} parent=1 // pred_fallthru
      _
    // Predicated region
    $region10: #{tpu_custom_call.1} parent=1 // pred_check
      _
    $region11: #{tpu_custom_call.1} parent=1 // pred_check_branch
      %34 = sbr.rel (0) target = $region13
    $region12: #{tpu_custom_call.1} parent=1 // pred_region
      _
    $region13: #{tpu_custom_call.1} parent=1 // pred_fallthru
      _
    // Predicated region
    $region14: #{tpu_custom_call.1} parent=1 // pred_check
      _
    $region15: #{tpu_custom_call.1} parent=1 // pred_check_branch
      %36 = sbr.rel (0) target = $region17
    $region16: #{tpu_custom_call.1} parent=1 // pred_region
      _
    $region17: #{tpu_custom_call.1} parent=1 // pred_fallthru
      _
    // Predicated region
    $region18: #{tpu_custom_call.1} parent=1 // pred_check
      _
    $region19: #{tpu_custom_call.1} parent=1 // pred_check_branch
      %38 = sbr.rel (0) target = $region21
    $region20: #{tpu_custom_call.1} parent=1 // pred_region
      _
    $region21: #{tpu_custom_call.1} parent=1 // pred_fallthru
      _
    // Predicated region
    $region22: #{tpu_custom_call.1} parent=1 // pred_check
      _
    $region23: #{tpu_custom_call.1} parent=1 // pred_check_branch
      %40 = sbr.rel (0) target = $region25
    $region24: #{tpu_custom_call.1} parent=1 // pred_region
      %41 = dma.done [#allocation4], 80
    $region25: #{tpu_custom_call.1} parent=1 // pred_fallthru
      _
    // Predicated region
    $region26: #{tpu_custom_call.1} parent=1 // pred_check
      _
    $region27: #{tpu_custom_call.1} parent=1 // pred_check_branch
      %43 = sbr.rel (0) target = $region29
    $region28: #{tpu_custom_call.1} parent=1 // pred_region
      %44 = dma.done [#allocation7], 80
    $region29: #{tpu_custom_call.1} parent=1 // pred_fallthru
      _
    %p45 = scmp.eq.s32.totalorder 0, 0
    // Predicated region
    $region30: #{tpu_custom_call.1} parent=1 // pred_check
      %p46 = pneg %p45
    $region31: #{tpu_custom_call.1} parent=1 // pred_check_branch
      %48 = sbr.rel (%p46) target = $region33
    $region32: #{tpu_custom_call.1} parent=1 // pred_region
      %v49 = vlaneseq
      %vm50 = vcmp.ge.s32.totalorder %v49, 0
      %vm51 = vcmp.lt.s32.totalorder %v49, 640
      %vm52 = vmand %vm50, %vm51
      %53 = vst.msk [vmem:[#allocation2] sm:$0x1f] %vm52, 0.0
      %v54 = vld [vmem:[#allocation3] sm:$0x1f]
      %v55 = vld [vmem:[#allocation6] sm:$0x1f]
      %v56 = vsub.f32 1.0, %v54
      %v57 = vmax.f32 %v54, 1e-07
      %v58 = vlog2.pop %v57
      %v59 = vmul.f32 %v58, 0.6931472
      %v60 = vmul.f32 %v55, %v59
      %v61 = vsub.f32 1.0, %v55
      %v62 = vmax.f32 %v56, 1e-07
      %v63 = vlog2.pop %v62
      %v64 = vmul.f32 %v63, 0.6931472
      %v65 = vmul.f32 %v61, %v64
      %v66 = vmul.f32 %v56, %v56
      %v67 = vmul.f32 %v60, %v66
      %v68 = vmul.f32 %v54, %v54
      %v69 = vmul.f32 %v65, %v68
      %v70 = vadd.f32 %v67, %v69
      %v71 = vld [vmem:[%s2] sm:$0x1f]
      %v72 = vmul.f32 %v71, %v70
      %v73 = vsub.f32 0.0, %v72
      %v74 = vld [vmem:[%s4] sm:$0x1f]
      %v75 = vld [vmem:[%s3] sm:$0x1f]
      %v76 = vsub.f32 %v56, %v75
      %v77 = vand.u32 2147483647, %v76
      %v78 = vmul.f32 %v74, %v77
      %v79 = vadd.f32 %v73, %v78
      %v80 = vlaneseq
      %v81 = vshrl.u32 %v80, 7
      %v82 = vlaneseq
      %v83 = vand.u32 %v82, 127
      %v84 = vadd.s32 %v83, 128
      %v85 = vadd.s32 %v83, 256
      %v86 = vadd.s32 %v83, 384
      %v87 = vadd.s32 %v83, 512
      %v88 = vstv 0
      %v89 = vadd.s32 %v88, %v81
      %v90 = vmul.u32 %v89, 640
      %v91 = vadd.s32 %v90, %v83
      %v92 = vadd.s32 %v90, %v84
      %v93 = vadd.s32 %v90, %v85
      %v94 = vadd.s32 %v90, %v86
      %v95 = vadd.s32 %v90, %v87
      %vm96 = vcmp.lt.s32.totalorder %v91, 80
      %vm97 = vcmp.lt.s32.totalorder %v92, 80
      %vm98 = vcmp.lt.s32.totalorder %v93, 80
      %vm99 = vcmp.lt.s32.totalorder %v94, 80
      %vm100 = vcmp.lt.s32.totalorder %v95, 80
      %v102 = vlaneseq
      %v103 = vshrl.u32 %v102, 7
      %v104 = vsub.s32 0, %v103
      %v105 = vrot.slane %v79, %v104
      %v106 = vlaneseq
      %v107 = vshrl.u32 %v106, 7
      %v108 = vsub.s32 1, %v107
      %v109 = vrot.slane %v79, %v108
      %v110 = vlaneseq
      %v111 = vshrl.u32 %v110, 7
      %v112 = vsub.s32 2, %v111
      %v113 = vrot.slane %v79, %v112
      %v114 = vlaneseq
      %v115 = vshrl.u32 %v114, 7
      %v116 = vsub.s32 3, %v115
      %v117 = vrot.slane %v79, %v116
      %v118 = vlaneseq
      %v119 = vshrl.u32 %v118, 7
      %v120 = vsub.s32 4, %v119
      %v121 = vrot.slane %v79, %v120
      %v127 = vsel %vm96, %v105, 0.0
      %v128 = vsel %vm97, %v109, 0.0
      %v129 = vsel %vm98, %v113, 0.0
      %v130 = vsel %vm99, %v117, 0.0
      %v131 = vsel %vm100, %v121, 0.0
      %v132 = vld [vmem:[#allocation2] sm:$0x1f]
      %v133 = vadd.f32 %v127, 0.0
      %v134 = vadd.f32 %v128, 0.0
      %v135 = vadd.f32 %v129, 0.0
      %v136 = vadd.f32 %v130, 0.0
      %v137 = vadd.f32 %v131, 0.0
      %v143 = vcombine.low %v133, %v134
      %v144 = vcombine.low %v135, %v136
      %v146 = vunpack.c.l.s4 1966171168
      %v147 = vunpack.c.0.s8 %v146
      %v148 = vlaneseq
      %v149 = vshrl.u32 %v148, 7
      %v150 = vsub.s32 %v147, %v149
      %v151 = vrot.slane %v143, %v150
      %v153 = vunpack.c.l.s4 1966171168
      %v154 = vunpack.c.0.s8 %v153
      %v155 = vlaneseq
      %v156 = vshrl.u32 %v155, 7
      %v157 = vsub.s32 %v154, %v156
      %v158 = vrot.slane %v144, %v157
      %v160 = vunpack.c.l.s4 1966171168
      %v161 = vunpack.c.0.s8 %v160
      %v162 = vlaneseq
      %v163 = vshrl.u32 %v162, 7
      %v164 = vsub.s32 %v161, %v163
      %v165 = vrot.slane %v137, %v164
      %v166 = vcombine.low %v151, %v158
      %v168 = vunpack.c.l.s4 1966171168
      %v169 = vunpack.c.0.s8 %v168
      %v170 = vlaneseq
      %v171 = vshrl.u32 %v170, 7
      %v172 = vsub.s32 %v169, %v171
      %v173 = vrot.slane %v166, %v172
      %v175 = vunpack.c.l.s4 1966171168
      %v176 = vunpack.c.0.s8 %v175
      %v177 = vlaneseq
      %v178 = vshrl.u32 %v177, 7
      %v179 = vsub.s32 %v176, %v178
      %v180 = vrot.slane %v165, %v179
      %v181 = vcombine.low %v173, %v180
      %v183 = vadd.f32 %v132, %v181
      %184 = vst.msk [vmem:[#allocation2] sm:$0x1f] %vm52, %v183
    $region33: #{tpu_custom_call.1} parent=1 // pred_fallthru
      _
    %p185 = scmp.ne.s32.totalorder 0, 0
    // Predicated region
    $region34: #{tpu_custom_call.1} parent=1 // pred_check
      %p186 = pneg %p185
    $region35: #{tpu_custom_call.1} parent=1 // pred_check_branch
      %188 = sbr.rel (%p186) target = $region37
    $region36: #{tpu_custom_call.1} parent=1 // pred_region
      %v189 = vld [vmem:[#allocation3] sm:$0x1f]
      %v190 = vld [vmem:[#allocation6] sm:$0x1f]
      %v191 = vsub.f32 1.0, %v189
      %v192 = vmax.f32 %v189, 1e-07
      %v193 = vlog2.pop %v192
      %v194 = vmul.f32 %v193, 0.6931472
      %v195 = vmul.f32 %v190, %v194
      %v196 = vsub.f32 1.0, %v190
      %v197 = vmax.f32 %v191, 1e-07
      %v198 = vlog2.pop %v197
      %v199 = vmul.f32 %v198, 0.6931472
      %v200 = vmul.f32 %v196, %v199
      %v201 = vmul.f32 %v191, %v191
      %v202 = vmul.f32 %v195, %v201
      %v203 = vmul.f32 %v189, %v189
      %v204 = vmul.f32 %v200, %v203
      %v205 = vadd.f32 %v202, %v204
      %v206 = vld [vmem:[%s2] sm:$0x1f]
      %v207 = vmul.f32 %v206, %v205
      %v208 = vsub.f32 0.0, %v207
      %v209 = vld [vmem:[%s4] sm:$0x1f]
      %v210 = vld [vmem:[%s3] sm:$0x1f]
      %v211 = vsub.f32 %v191, %v210
      %v212 = vand.u32 2147483647, %v211
      %v213 = vmul.f32 %v209, %v212
      %v214 = vadd.f32 %v208, %v213
      %v215 = vld [vmem:[#allocation2] sm:$0x1f]
      %v216 = vadd.f32 %v214, 0.0
      %v217 = vadd.f32 %v215, %v216
      %v218 = vlaneseq
      %vm219 = vcmp.ge.s32.totalorder %v218, 0
      %vm220 = vcmp.lt.s32.totalorder %v218, 640
      %vm221 = vmand %vm219, %vm220
      %222 = vst.msk [vmem:[#allocation2] sm:$0x1f] %vm221, %v217
    $region37: #{tpu_custom_call.1} parent=1 // pred_fallthru
      _
    // Predicated region
    $region38: #{tpu_custom_call.1} parent=1 // pred_check
      %p223 = pneg %p45
    $region39: #{tpu_custom_call.1} parent=1 // pred_check_branch
      %225 = sbr.rel (%p223) target = $region41
    $region40: #{tpu_custom_call.1} parent=1 // pred_region
      %v226 = vld [vmem:[#allocation2] sm:$0x1f]
      %v228 = vlaneseq
      %v229 = vshrl.u32 %v228, 7
      %v230 = vsub.s32 0, %v229
      %v231 = vrot.slane %v226, %v230
      %v232 = vlaneseq
      %v233 = vshrl.u32 %v232, 7
      %v234 = vsub.s32 1, %v233
      %v235 = vrot.slane %v226, %v234
      %v236 = vlaneseq
      %v237 = vshrl.u32 %v236, 7
      %v238 = vsub.s32 2, %v237
      %v239 = vrot.slane %v226, %v238
      %v240 = vlaneseq
      %v241 = vshrl.u32 %v240, 7
      %v242 = vsub.s32 3, %v241
      %v243 = vrot.slane %v226, %v242
      %v244 = vlaneseq
      %v245 = vshrl.u32 %v244, 7
      %v246 = vsub.s32 4, %v245
      %v247 = vrot.slane %v226, %v246
      %vm253 = vcmask 1040384
      %v254 = vsel %vm253, %v231, 0.0
      %v255 = vsel %vm253, %v235, 0.0
      %v256 = vadd.f32 %v254, %v255
      %v257 = vsel %vm253, %v239, 0.0
      %v258 = vadd.f32 %v256, %v257
      %v259 = vsel %vm253, %v243, 0.0
      %v260 = vadd.f32 %v258, %v259
      %v261 = vsel %vm253, %v247, 0.0
      %v262 = vadd.f32 %v260, %v261
      %263 = vadd.xlane.f32.xlu0 %v262
      %v264 = vpop.xlane.xlu0 %263
      %v265 = vrot.slane %v264, 4
      %v266 = vadd.f32 %v264, %v265
      %v267 = vrot.slane %v266, 2
      %v268 = vadd.f32 %v266, %v267
      %v269 = vrot.slane %v268, 1
      %v270 = vadd.f32 %v268, %v269
      %s271 = vtos %v270
      %v272 = vstv %s271
      %v273 = vmul.f32 %v272, 0.125
      %vm274 = vcmask 0
      %275 = vst.msk [vmem:[#allocation8] sm:$0x1] %vm274, %v273
    $region41: #{tpu_custom_call.1} parent=1 // pred_fallthru
      _
    // Predicated region
    $region42: #{tpu_custom_call.1} parent=1 // pred_check
      _
    $region43: #{tpu_custom_call.1} parent=1 // pred_check_branch
      %277 = sbr.rel (0) target = $region45
    $region44: #{tpu_custom_call.1} parent=1 // pred_region
      %s279 = ssub.s32 16, 16
      %280 = vsyncadd [#allocation5], %s279
      %s282 = sshll.u32 [#allocation8], 4
      %s283 = int_to_ptr.vmem [resolvable:$true] %s282
      %285 = dma.vmem_to_hbm [thread:$0]  %s283, 16, %s5, [#allocation5]
    $region45: #{tpu_custom_call.1} parent=1 // pred_fallthru
      _
    // Predicated region
    $region46: #{tpu_custom_call.1} parent=1 // pred_check
      _
    $region47: #{tpu_custom_call.1} parent=1 // pred_check_branch
      %287 = sbr.rel (0) target = $region49
    $region48: #{tpu_custom_call.1} parent=1 // pred_region
      %288 = dma.done [#allocation5], 16
    $region49: #{tpu_custom_call.1} parent=1 // pred_fallthru
      _
    %289 = vsyncpa [#allocation4], 1
    %290 = vsyncpa [#allocation7], 1
    %291 = vsyncpa [#allocation5], 1

</llo_original>
